<compile_context>
chip_gen: v6e
topology: v6e:2x2x1
jax: 0.10.0
libtpu: 0.0.40
codegen_flags: <defaults>
</compile_context>

<pallas_src>
import math
import functools

import jax
import jax.numpy as jnp
from jax import lax
from jax.experimental import pallas as pl
from jax.experimental.pallas import tpu as pltpu

_INV_SQRT2 = 1.0 / math.sqrt(2.0)
_SQRT_2_OVER_PI = math.sqrt(2.0 / math.pi)
_GELU_C = 0.044715


def _gelu(h, approximate):
    if approximate:
        # tanh -> EUP slot; keeps the VPU free so the kernel stays MXU-bound.
        # Differs from PyTorch's exact-erf nn.GELU() by ~1e-3.
        return 0.5 * h * (1.0 + jnp.tanh(_SQRT_2_OVER_PI * (h + _GELU_C * h * h * h)))
    return 0.5 * h * (1.0 + lax.erf(h * _INV_SQRT2))


# ---------------------------------------------------------------------------
# Kernels
# ---------------------------------------------------------------------------
def _ff_kernel_resident(x_ref, w1_ref, b1_ref, w2_ref, b2_ref, o_ref, *,
                        approximate):
    # Weights/biases are VMEM-resident (constant index maps -> fetched once).
    h = jnp.dot(x_ref[...], w1_ref[...], preferred_element_type=jnp.float32)
    h = _gelu(h + b1_ref[...], approximate)
    # TODO(synk): Dropout(p=0.0) is identity; p>0 (training) would need
    # pltpu.prng_seed / pltpu.prng_random_bits masking here.
    out = jnp.dot(h.astype(w2_ref.dtype), w2_ref[...],
                  preferred_element_type=jnp.float32)
    o_ref[...] = (out + b2_ref[...]).astype(o_ref.dtype)


def _ff_kernel_tiled(x_ref, w1_ref, b1_ref, w2_ref, b2_ref, o_ref, acc_ref, *,
                     approximate):
    # H-tiled reduction: accumulate GELU(x@W1_h + b1_h) @ W2_h into f32 scratch.
    h_step = pl.program_id(1)

    @pl.when(h_step == 0)
    def _():
        acc_ref[...] = jnp.zeros_like(acc_ref)

    h = jnp.dot(x_ref[...], w1_ref[...], preferred_element_type=jnp.float32)
    h = _gelu(h + b1_ref[...], approximate)
    acc_ref[...] += jnp.dot(h.astype(w2_ref.dtype), w2_ref[...],
                            preferred_element_type=jnp.float32)

    @pl.when(h_step == pl.num_programs(1) - 1)
    def _():
        o_ref[...] = (acc_ref[...] + b2_ref[...]).astype(o_ref.dtype)


# ---------------------------------------------------------------------------
# Wrapper
# ---------------------------------------------------------------------------
def _round_up(x, m):
    return (x + m - 1) // m * m


def _pad2d(a, rows, cols):
    r, c = a.shape
    if r == rows and c == cols:
        return a
    return jnp.pad(a, ((0, rows - r), (0, cols - c)))


def _tpu_config():
    """Generation-aware tiling / VMEM defaults (trace-time query)."""
    try:
        kind = jax.devices()[0].device_kind.lower()
    except Exception:  # pragma: no cover
        kind = ""
    if "7" in kind:          # v7x: 64 MiB VMEM/TC, 2 TCs/chip, 256-wide MXU
        return dict(vmem_budget=48 << 20, tile_m=512, tile_h=512, mxu_m=256, cores=2)
    if "v6" in kind:         # v6e: 128 MiB VMEM, 1 TC, 256-wide MXU
        return dict(vmem_budget=100 << 20, tile_m=1024, tile_h=1024, mxu_m=256, cores=1)
    if "v5" in kind:         # v5e/v5p: 128 MiB VMEM, 1 TC, 128-wide MXU
        return dict(vmem_budget=100 << 20, tile_m=512, tile_h=1024, mxu_m=128, cores=1)
    # Unknown backend: conservative defaults.
    return dict(vmem_budget=48 << 20, tile_m=512, tile_h=512, mxu_m=256, cores=1)


@functools.partial(
    jax.jit,
    static_argnames=("tile_m", "tile_h", "compute_dtype", "approximate_gelu",
                     "force_tiled"))
def feed_forward(x, w1, b1, w2, b2, *, tile_m=None, tile_h=None,
                 compute_dtype=jnp.bfloat16, approximate_gelu=True,
                 force_tiled=False):
    """x: [B, N, D]; w1: [D, H]; b1: [H]; w2: [H, D]; b2: [D] -> [B, N, D]."""
    B, N, D = x.shape
    H = w1.shape[1]
    M = B * N
    out_dtype = x.dtype

    cfg = _tpu_config()
    tile_m = cfg["tile_m"] if tile_m is None else tile_m
    tile_h = cfg["tile_h"] if tile_h is None else tile_h
    vmem_budget = cfg["vmem_budget"]
    mxu_m = cfg["mxu_m"]

    cb = jnp.dtype(compute_dtype).itemsize
    ob = jnp.dtype(out_dtype).itemsize
    m_mult = 16 if cb < 4 else 8          # sublane packing for bf16

    Dp = _round_up(D, 128)
    Hp0 = _round_up(H, 128)

    # --- row tile: honor small explicit requests, round big ones to MXU width --
    TM = min(_round_up(tile_m, m_mult), _round_up(M, m_mult))
    if TM >= mxu_m:
        TM = (TM // mxu_m) * mxu_m
    if cfg["cores"] >= 2 and M >= 2 * m_mult:
        # keep >=2 row tiles so the parallel M axis shards across both v7x TCs
        TM = min(TM, _round_up((M + 1) // 2, m_mult))

    # --- VMEM footprint models (double-buffered BlockSpec tiles) ---------------
    def _res_fp(tm):
        return (4 * Dp * Hp0 * cb            # W1 + W2 (x2 buffering)
                + 2 * tm * Dp * cb            # x tile
                + 2 * tm * Dp * ob            # out tile
                + 2 * (Hp0 + Dp) * 4          # biases
                + tm * Hp0 * (4 + cb))        # f32 intermediate + bf16 cast

    def _tiled_fp(tm, th):
        return (2 * tm * Dp * cb + 2 * tm * Dp * ob
                + 2 * Dp * th * cb + 2 * th * Dp * cb
                + 2 * (th + Dp) * 4
                + tm * Dp * 4                 # f32 accumulator scratch
                + tm * th * (4 + cb))         # f32 intermediate + bf16 cast

    use_resident = (not force_tiled) and (4 * Dp * Hp0 * cb <= vmem_budget // 2)
    if use_resident:
        tm_r = TM
        while _res_fp(tm_r) > vmem_budget and tm_r > m_mult:
            tm_r = max(m_mult, (tm_r // 2 // m_mult) * m_mult)
        if _res_fp(tm_r) <= vmem_budget:
            TM = tm_r
        else:
            use_resident = False

    # --- pad + cast operands ----------------------------------------------------
    # TODO(synk): for weight-stationary inference, hoist this weight pad+cast out
    # of the per-call path and reuse the prepared bf16 padded weights.
    def _prep(Hp):
        w1p = _pad2d(w1, Dp, Hp).astype(compute_dtype)
        w2p = _pad2d(w2, Hp, Dp).astype(compute_dtype)
        b1p = _pad2d(b1.reshape(1, H), 1, Hp).astype(jnp.float32)
        b2p = _pad2d(b2.reshape(1, D), 1, Dp).astype(jnp.float32)
        return w1p, b1p, w2p, b2p

    if use_resident:
        Hp = Hp0
        Mp = _round_up(M, TM)
        x2d = _pad2d(x.reshape(M, D), Mp, Dp).astype(compute_dtype)
        w1p, b1p, w2p, b2p = _prep(Hp)

        vmem_limit = min(int(_res_fp(TM) * 1.3) + (4 << 20), vmem_budget)
        cost = pl.CostEstimate(
            flops=4 * Mp * Dp * Hp,
            transcendentals=Mp * Hp,
            bytes_accessed=(Mp * Dp * cb + 2 * Dp * Hp * cb      # weights once
                            + (Hp + Dp) * 4 + Mp * Dp * ob))

        out2d = pl.pallas_call(
            functools.partial(_ff_kernel_resident, approximate=approximate_gelu),
            out_shape=jax.ShapeDtypeStruct((Mp, Dp), out_dtype),
            grid_spec=pltpu.PrefetchScalarGridSpec(
                num_scalar_prefetch=0,
                grid=(Mp // TM,),
                in_specs=[
                    pl.BlockSpec((TM, Dp), lambda i: (i, 0)),    # x row tile
                    pl.BlockSpec((Dp, Hp), lambda i: (0, 0)),    # W1 (resident)
                    pl.BlockSpec((1, Hp), lambda i: (0, 0)),     # b1 (resident)
                    pl.BlockSpec((Hp, Dp), lambda i: (0, 0)),    # W2 (resident)
                    pl.BlockSpec((1, Dp), lambda i: (0, 0)),     # b2 (resident)
                ],
                out_specs=pl.BlockSpec((TM, Dp), lambda i: (i, 0)),
            ),
            compiler_params=pltpu.CompilerParams(
                dimension_semantics=("parallel",),
                vmem_limit_bytes=vmem_limit),
            cost_estimate=cost,
        )(x2d, w1p, b1p, w2p, b2p)
    else:
        # --- H-tiled fallback (weights too large for VMEM residence) -----------
        TH = min(_round_up(tile_h, 128), Hp0)
        if TH >= mxu_m:
            TH = (TH // mxu_m) * mxu_m
        while _tiled_fp(TM, TH) > vmem_budget and TH > 128:
            TH = max(128, (TH // 2 // 128) * 128)
        while _tiled_fp(TM, TH) > vmem_budget and TM > m_mult:
            TM = max(m_mult, (TM // 2 // m_mult) * m_mult)

        Hp = _round_up(Hp0, TH)
        Mp = _round_up(M, TM)
        x2d = _pad2d(x.reshape(M, D), Mp, Dp).astype(compute_dtype)
        w1p, b1p, w2p, b2p = _prep(Hp)

        grid = (Mp // TM, Hp // TH)
        vmem_limit = min(int(_tiled_fp(TM, TH) * 1.3) + (4 << 20), vmem_budget)
        cost = pl.CostEstimate(
            flops=4 * Mp * Dp * Hp,
            transcendentals=Mp * Hp,
            bytes_accessed=(Mp * Dp * cb
                            + grid[0] * 2 * Dp * Hp * cb         # weights re-streamed
                            + (Hp + Dp) * 4 + Mp * Dp * ob))

        out2d = pl.pallas_call(
            functools.partial(_ff_kernel_tiled, approximate=approximate_gelu),
            out_shape=jax.ShapeDtypeStruct((Mp, Dp), out_dtype),
            grid_spec=pltpu.PrefetchScalarGridSpec(
                num_scalar_prefetch=0,
                grid=grid,
                in_specs=[
                    pl.BlockSpec((TM, Dp), lambda i, h: (i, 0)),   # x row tile
                    pl.BlockSpec((Dp, TH), lambda i, h: (0, h)),   # W1 col tile
                    pl.BlockSpec((1, TH), lambda i, h: (0, h)),    # b1 tile
                    pl.BlockSpec((TH, Dp), lambda i, h: (h, 0)),   # W2 row tile
                    pl.BlockSpec((1, Dp), lambda i, h: (0, 0)),    # b2 (resident)
                ],
                out_specs=pl.BlockSpec((TM, Dp), lambda i, h: (i, 0)),
                scratch_shapes=[pltpu.VMEM((TM, Dp), jnp.float32)],
            ),
            compiler_params=pltpu.CompilerParams(
                dimension_semantics=("parallel", "arbitrary"),
                vmem_limit_bytes=vmem_limit),
            cost_estimate=cost,
        )(x2d, w1p, b1p, w2p, b2p)

    return out2d[:M, :D].reshape(B, N, D)


# ---------------------------------------------------------------------------
# Reference + tests
# ---------------------------------------------------------------------------
def _reference(x, w1, b1, w2, b2, approximate):
    h = jnp.dot(x, w1) + b1
    h = _gelu(h, approximate)
    return jnp.dot(h, w2) + b2


def _make_params(keys, D, H):
    k1, k2, k3, k4 = keys
    lim1 = 1.0 / math.sqrt(D)
    lim2 = 1.0 / math.sqrt(H)
    w1 = jax.random.uniform(k1, (D, H), jnp.float32, -lim1, lim1)   # Linear(D,H).weight.T
    b1 = jax.random.uniform(k2, (H,), jnp.float32, -lim1, lim1)
    w2 = jax.random.uniform(k3, (H, D), jnp.float32, -lim2, lim2)   # Linear(H,D).weight.T
    b2 = jax.random.uniform(k4, (D,), jnp.float32, -lim2, lim2)
    return w1, b1, w2, b2


if __name__ == "__main__":
    key = jax.random.PRNGKey(0)
    keys = jax.random.split(key, 10)

    # Case 1: lane-aligned shapes, default (generation-aware) tiles.
    # Small weights -> exercises the weight-resident single-pass path.
    B, N, D, H = 2, 64, 128, 256
    x = jax.random.normal(keys[0], (B, N, D), dtype=jnp.float32)
    w1, b1, w2, b2 = _make_params(keys[1:5], D, H)
    out = feed_forward(x, w1, b1, w2, b2)
    jax.block_until_ready(out)
    ref = _reference(x, w1, b1, w2, b2, approximate=True)
    assert out.shape == (B, N, D)
    err = float(jnp.max(jnp.abs(out - ref)))
    assert jnp.allclose(out, ref, atol=2e-2, rtol=2e-2), f"case1 max abs err {err}"

    # Case 2: unaligned D/H (pad-to-128 wrapper path) + exact-erf GELU parity.
    B2, N2, D2, H2 = 2, 8, 32, 96
    x2 = jax.random.normal(keys[5], (B2, N2, D2), dtype=jnp.float32)
    p2 = _make_params(keys[6:10], D2, H2)
    out2 = feed_forward(x2, *p2, approximate_gelu=False)
    jax.block_until_ready(out2)
    ref2 = _reference(x2, *p2, approximate=False)
    assert out2.shape == (B2, N2, D2)
    err2 = float(jnp.max(jnp.abs(out2 - ref2)))
    assert jnp.allclose(out2, ref2, atol=2e-2, rtol=2e-2), f"case2 max abs err {err2}"

    # Case 3: force the H-tiled accumulator path (2x2 grid) to exercise the
    # pl.when init/finalize + f32 scratch reduction used for huge FFNs.
    out3 = feed_forward(x, w1, b1, w2, b2, tile_m=64, tile_h=128, force_tiled=True)
    jax.block_until_ready(out3)
    err3 = float(jnp.max(jnp.abs(out3 - ref)))
    assert jnp.allclose(out3, ref, atol=2e-2, rtol=2e-2), f"case3 max abs err {err3}"

    print("KERNEL_OK")
</pallas_src>

<mosaic_0001>
module attributes {stable_mosaic.version = 11 : i64} {
  func.func @_ff_kernel_resident(%arg0: i32, %arg1: memref<128x128xbf16, #tpu.memory_space<vmem>>, %arg2: memref<128x256xbf16, #tpu.memory_space<vmem>>, %arg3: memref<1x256xf32, #tpu.memory_space<vmem>>, %arg4: memref<256x128xbf16, #tpu.memory_space<vmem>>, %arg5: memref<1x128xf32, #tpu.memory_space<vmem>>, %arg6: memref<128x128xf32, #tpu.memory_space<vmem>>) attributes {dimension_semantics = [#tpu.dimension_semantics<parallel>], iteration_bounds = array<i64: 1>, scalar_prefetch = 0 : i64, scratch_operands = 0 : i64, tpu.core_type = #tpu.core_type<tc>, window_params = [{transform_indices = @transform_0, window_bounds = array<i64: 128, 128>}, {pipeline_mode = #tpu.pipeline_mode<synchronous>, transform_indices = @transform_1, window_bounds = array<i64: 128, 256>}, {pipeline_mode = #tpu.pipeline_mode<synchronous>, transform_indices = @transform_2, window_bounds = array<i64: 1, 256>}, {pipeline_mode = #tpu.pipeline_mode<synchronous>, transform_indices = @transform_3, window_bounds = array<i64: 256, 128>}, {pipeline_mode = #tpu.pipeline_mode<synchronous>, transform_indices = @transform_4, window_bounds = array<i64: 1, 128>}, {transform_indices = @transform_5, window_bounds = array<i64: 128, 128>}]} {
    %c0 = arith.constant 0 : index
    %c0_0 = arith.constant 0 : index
    %0 = vector.load %arg1[%c0, %c0_0] : memref<128x128xbf16, #tpu.memory_space<vmem>>, vector<128x128xbf16>
    %c0_1 = arith.constant 0 : index
    %c0_2 = arith.constant 0 : index
    %1 = vector.load %arg2[%c0_1, %c0_2] : memref<128x256xbf16, #tpu.memory_space<vmem>>, vector<128x256xbf16>
    %cst = arith.constant dense<0.000000e+00> : vector<128x256xf32>
    %2 = tpu.matmul %0, %1, %cst {dimension_numbers = #tpu.dot_dimension_numbers<[1], [0], [0], [1], [0, 0, 1, 1], [], []>} : vector<128x128xbf16>, vector<128x256xbf16>, vector<128x256xf32> -> vector<128x256xf32>
    %c0_3 = arith.constant 0 : index
    %c0_4 = arith.constant 0 : index
    %3 = vector.load %arg3[%c0_3, %c0_4] : memref<1x256xf32, #tpu.memory_space<vmem>>, vector<1x256xf32>
    %4 = vector.broadcast %3 : vector<1x256xf32> to vector<128x256xf32>
    %5 = arith.addf %2, %4 : vector<128x256xf32>
    %cst_5 = arith.constant 5.000000e-01 : f32
    %6 = vector.broadcast %cst_5 : f32 to vector<128x256xf32>
    %7 = arith.mulf %6, %5 : vector<128x256xf32>
    %cst_6 = arith.constant 4.471500e-02 : f32
    %8 = vector.broadcast %cst_6 : f32 to vector<128x256xf32>
    %9 = arith.mulf %8, %5 : vector<128x256xf32>
    %10 = arith.mulf %9, %5 : vector<128x256xf32>
    %11 = arith.mulf %10, %5 : vector<128x256xf32>
    %12 = arith.addf %5, %11 : vector<128x256xf32>
    %cst_7 = arith.constant 0.797884583 : f32
    %13 = vector.broadcast %cst_7 : f32 to vector<128x256xf32>
    %14 = arith.mulf %13, %12 : vector<128x256xf32>
    %15 = math.tanh %14 : vector<128x256xf32>
    %cst_8 = arith.constant 1.000000e+00 : f32
    %16 = vector.broadcast %cst_8 : f32 to vector<128x256xf32>
    %17 = arith.addf %16, %15 : vector<128x256xf32>
    %18 = arith.mulf %7, %17 : vector<128x256xf32>
    %19 = arith.truncf %18 : vector<128x256xf32> to vector<128x256xbf16>
    %c0_9 = arith.constant 0 : index
    %c0_10 = arith.constant 0 : index
    %20 = vector.load %arg4[%c0_9, %c0_10] : memref<256x128xbf16, #tpu.memory_space<vmem>>, vector<256x128xbf16>
    %cst_11 = arith.constant dense<0.000000e+00> : vector<128x128xf32>
    %21 = tpu.matmul %19, %20, %cst_11 {dimension_numbers = #tpu.dot_dimension_numbers<[1], [0], [0], [1], [0, 0, 1, 1], [], []>} : vector<128x256xbf16>, vector<256x128xbf16>, vector<128x128xf32> -> vector<128x128xf32>
    %c0_12 = arith.constant 0 : index
    %c0_13 = arith.constant 0 : index
    %22 = vector.load %arg5[%c0_12, %c0_13] : memref<1x128xf32, #tpu.memory_space<vmem>>, vector<1x128xf32>
    %23 = vector.broadcast %22 : vector<1x128xf32> to vector<128x128xf32>
    %24 = arith.addf %21, %23 : vector<128x128xf32>
    %c0_14 = arith.constant 0 : index
    %c0_15 = arith.constant 0 : index
    %25 = vector.load %arg6[%c0_14, %c0_15] : memref<128x128xf32, #tpu.memory_space<vmem>>, vector<128x128xf32>
    tpu.vector_store %arg6[%c0_14, %c0_15], %24 {strides = array<i32>} : memref<128x128xf32, #tpu.memory_space<vmem>>, vector<128x128xf32>,
    return
  }
  func.func @transform_0(%arg0: i32) -> (i32, i32) {
    %c0_i32 = arith.constant 0 : i32
    %c0_i32_0 = arith.constant 0 : i32
    return %arg0, %c0_i32 : i32, i32
  }
  func.func @transform_1(%arg0: i32) -> (i32, i32) {
    %c0_i32 = arith.constant 0 : i32
    %c0_i32_0 = arith.constant 0 : i32
    %c0_i32_1 = arith.constant 0 : i32
    return %c0_i32, %c0_i32_0 : i32, i32
  }
  func.func @transform_2(%arg0: i32) -> (i32, i32) {
    %c0_i32 = arith.constant 0 : i32
    %c0_i32_0 = arith.constant 0 : i32
    %c0_i32_1 = arith.constant 0 : i32
    return %c0_i32, %c0_i32_0 : i32, i32
  }
  func.func @transform_3(%arg0: i32) -> (i32, i32) {
    %c0_i32 = arith.constant 0 : i32
    %c0_i32_0 = arith.constant 0 : i32
    %c0_i32_1 = arith.constant 0 : i32
    return %c0_i32, %c0_i32_0 : i32, i32
  }
  func.func @transform_4(%arg0: i32) -> (i32, i32) {
    %c0_i32 = arith.constant 0 : i32
    %c0_i32_0 = arith.constant 0 : i32
    %c0_i32_1 = arith.constant 0 : i32
    return %c0_i32, %c0_i32_0 : i32, i32
  }
  func.func @transform_5(%arg0: i32) -> (i32, i32) {
    %c0_i32 = arith.constant 0 : i32
    %c0_i32_0 = arith.constant 0 : i32
    return %arg0, %c0_i32 : i32, i32
  }
}

</mosaic_0001>

<llo_original>
// kernel: feed_forward.1
$region0: #{feed_forward.1}
  #allocation0 [shape = 'u32[]', space=smem, size = 0x4, offset = 0x4, fixed_abs, tag = 'smem constant byte address 0x4 - core index']
  #allocation1 [shape = 'u32[144,128]{1,0:T(1,128)}', space=vmem, size = 0x12000, scoped, tag = 'internal scratch']
  %s0 = inlined_call_operand.vmem [shape: bf16[128,128], index: 0, kind: input, shape index: {}]
  %s1 = inlined_call_operand.vmem [shape: bf16[128,256], index: 1, kind: input, shape index: {}]
  %s2 = inlined_call_operand.vmem [shape: f32[1,256], index: 2, kind: input, shape index: {}]
  %s3 = inlined_call_operand.vmem [shape: bf16[256,128], index: 3, kind: input, shape index: {}]
  %s4 = inlined_call_operand.vmem [shape: f32[1,128], index: 4, kind: input, shape index: {}]
  %s5 = inlined_call_operand.hbm [shape: f32[128,128], index: 5, kind: output, shape index: {}]
  %s6 = sld [smem:[#allocation0]]
  $region30: #{feed_forward.1} parent=0
    _
  %s8 = ssub.s32 1, %s6
  %s9 = scalar_select 0, %s8, %s6
  $region1: #{feed_forward.1} parent=0
    #allocation2 [shape = 'u8[65536]{0}', space=vmem, size = 0x10000, scoped, tag = 'output window, operand 0, single buffered']
    #allocation3 [shape = 's32[1]{0}', space=sflag, size = 0x4, scoped, tag = 'scoped memory for feed_forward.1']
    %10 = vsyncpa [#allocation3], 0
    // Predicated region
    $region2: #{feed_forward.1} parent=1 // pred_check
      _
    $region3: #{feed_forward.1} parent=1 // pred_check_branch
      %12 = sbr.rel (0) target = $region5
    $region4: #{feed_forward.1} parent=1 // pred_region
      _
    $region5: #{feed_forward.1} parent=1 // pred_fallthru
      _
    // Predicated region
    $region6: #{feed_forward.1} parent=1 // pred_check
      _
    $region7: #{feed_forward.1} parent=1 // pred_check_branch
      %14 = sbr.rel (0) target = $region9
    $region8: #{feed_forward.1} parent=1 // pred_region
      _
    $region9: #{feed_forward.1} parent=1 // pred_fallthru
      _
    // Predicated region
    $region10: #{feed_forward.1} parent=1 // pred_check
      _
    $region11: #{feed_forward.1} parent=1 // pred_check_branch
      %16 = sbr.rel (0) target = $region13
    $region12: #{feed_forward.1} parent=1 // pred_region
      _
    $region13: #{feed_forward.1} parent=1 // pred_fallthru
      _
    // Predicated region
    $region14: #{feed_forward.1} parent=1 // pred_check
      _
    $region15: #{feed_forward.1} parent=1 // pred_check_branch
      %18 = sbr.rel (0) target = $region17
    $region16: #{feed_forward.1} parent=1 // pred_region
      _
    $region17: #{feed_forward.1} parent=1 // pred_fallthru
      _
    // Predicated region
    $region18: #{feed_forward.1} parent=1 // pred_check
      _
    $region19: #{feed_forward.1} parent=1 // pred_check_branch
      %20 = sbr.rel (0) target = $region21
    $region20: #{feed_forward.1} parent=1 // pred_region
      _
    $region21: #{feed_forward.1} parent=1 // pred_fallthru
      _
    %v22 = vld [vmem:[%s0] sm:$0xf]
    %v23 = vld [vmem:[%s0 + $0x4] sm:$0xf]
    %v24 = vld [vmem:[%s0 + $0x8] sm:$0xf]
    %v25 = vld [vmem:[%s0 + $0xc] sm:$0xf]
    %v26 = vld [vmem:[%s0 + $0x10] sm:$0xf]
    %v27 = vld [vmem:[%s0 + $0x14] sm:$0xf]
    %v28 = vld [vmem:[%s0 + $0x18] sm:$0xf]
    %v29 = vld [vmem:[%s0 + $0x1c] sm:$0xf]
    %v30 = vld [vmem:[%s0 + $0x20] sm:$0xf]
    %v31 = vld [vmem:[%s0 + $0x24] sm:$0xf]
    %v32 = vld [vmem:[%s0 + $0x28] sm:$0xf]
    %v33 = vld [vmem:[%s0 + $0x2c] sm:$0xf]
    %v34 = vld [vmem:[%s0 + $0x30] sm:$0xf]
    %v35 = vld [vmem:[%s0 + $0x34] sm:$0xf]
    %v36 = vld [vmem:[%s0 + $0x38] sm:$0xf]
    %v37 = vld [vmem:[%s0 + $0x3c] sm:$0xf]
    %v38 = vld [vmem:[%s1] sm:$0xff]
    %v39 = vld [vmem:[%s1 + $0x8] sm:$0xff]
    %v40 = vld [vmem:[%s1 + $0x10] sm:$0xff]
    %v41 = vld [vmem:[%s1 + $0x18] sm:$0xff]
    %v42 = vld [vmem:[%s1 + $0x20] sm:$0xff]
    %v43 = vld [vmem:[%s1 + $0x28] sm:$0xff]
    %v44 = vld [vmem:[%s1 + $0x30] sm:$0xff]
    %v45 = vld [vmem:[%s1 + $0x38] sm:$0xff]
    %v46 = vld [vmem:[%s1 + $0x40] sm:$0xff]
    %v47 = vld [vmem:[%s1 + $0x48] sm:$0xff]
    %v48 = vld [vmem:[%s1 + $0x50] sm:$0xff]
    %v49 = vld [vmem:[%s1 + $0x58] sm:$0xff]
    %v50 = vld [vmem:[%s1 + $0x60] sm:$0xff]
    %v51 = vld [vmem:[%s1 + $0x68] sm:$0xff]
    %v52 = vld [vmem:[%s1 + $0x70] sm:$0xff]
    %v53 = vld [vmem:[%s1 + $0x78] sm:$0xff]
    %v54 = vld [vmem:[%s2] sm:$0x3]
    %v56 = vlaneseq
    %v57 = vshrl.u32 %v56, 7
    %v58 = vsub.s32 0, %v57
    %v59 = vrot.slane %v54, %v58
    %v60 = vlaneseq
    %v61 = vshrl.u32 %v60, 7
    %v62 = vsub.s32 1, %v61
    %v63 = vrot.slane %v54, %v62
    %v82 = vunpack.c.l.b16 %v22
    %v83 = vunpack.c.l.b16 %v23
    %v84 = vunpack.c.l.b16 %v24
    %v85 = vunpack.c.l.b16 %v25
    %v86 = vunpack.c.l.b16 %v26
    %v87 = vunpack.c.l.b16 %v27
    %v88 = vunpack.c.l.b16 %v28
    %v89 = vunpack.c.l.b16 %v29
    %v90 = vunpack.c.l.b16 %v30
    %v91 = vunpack.c.l.b16 %v31
    %v92 = vunpack.c.l.b16 %v32
    %v93 = vunpack.c.l.b16 %v33
    %v94 = vunpack.c.l.b16 %v34
    %v95 = vunpack.c.l.b16 %v35
    %v96 = vunpack.c.l.b16 %v36
    %v97 = vunpack.c.l.b16 %v37
    %v98 = vpack.c.b16 %v83, %v82
    %v99 = vpack.c.b16 %v85, %v84
    %v100 = vpack.c.b16 %v87, %v86
    %v101 = vpack.c.b16 %v89, %v88
    %v102 = vpack.c.b16 %v91, %v90
    %v103 = vpack.c.b16 %v93, %v92
    %v104 = vpack.c.b16 %v95, %v94
    %v105 = vpack.c.b16 %v97, %v96
    %v130 = vunpack.c.l.b16 %v38
    %v131 = vunpack.c.h.b16 %v38
    %v132 = vunpack.c.l.b16 %v39
    %v133 = vunpack.c.h.b16 %v39
    %v134 = vunpack.c.l.b16 %v40
    %v135 = vunpack.c.h.b16 %v40
    %v136 = vunpack.c.l.b16 %v41
    %v137 = vunpack.c.h.b16 %v41
    %v138 = vunpack.c.l.b16 %v42
    %v139 = vunpack.c.h.b16 %v42
    %v140 = vunpack.c.l.b16 %v43
    %v141 = vunpack.c.h.b16 %v43
    %v142 = vunpack.c.l.b16 %v44
    %v143 = vunpack.c.h.b16 %v44
    %v144 = vunpack.c.l.b16 %v45
    %v145 = vunpack.c.h.b16 %v45
    %v146 = vunpack.c.l.b16 %v46
    %v147 = vunpack.c.h.b16 %v46
    %v148 = vunpack.c.l.b16 %v47
    %v149 = vunpack.c.h.b16 %v47
    %v150 = vunpack.c.l.b16 %v48
    %v151 = vunpack.c.h.b16 %v48
    %v152 = vunpack.c.l.b16 %v49
    %v153 = vunpack.c.h.b16 %v49
    %v154 = vunpack.c.l.b16 %v50
    %v155 = vunpack.c.h.b16 %v50
    %v156 = vunpack.c.l.b16 %v51
    %v157 = vunpack.c.h.b16 %v51
    %v158 = vunpack.c.l.b16 %v52
    %v159 = vunpack.c.h.b16 %v52
    %v160 = vunpack.c.l.b16 %v53
    %v161 = vunpack.c.h.b16 %v53
    %v162 = vpack.c.b16 %v132, %v130
    %v163 = vpack.c.b16 %v133, %v131
    %v164 = vpack.c.b16 %v136, %v134
    %v165 = vpack.c.b16 %v137, %v135
    %v166 = vpack.c.b16 %v140, %v138
    %v167 = vpack.c.b16 %v141, %v139
    %v168 = vpack.c.b16 %v144, %v142
    %v169 = vpack.c.b16 %v145, %v143
    %v170 = vpack.c.b16 %v148, %v146
    %v171 = vpack.c.b16 %v149, %v147
    %v172 = vpack.c.b16 %v152, %v150
    %v173 = vpack.c.b16 %v153, %v151
    %v174 = vpack.c.b16 %v156, %v154
    %v175 = vpack.c.b16 %v157, %v155
    %v176 = vpack.c.b16 %v160, %v158
    %v177 = vpack.c.b16 %v161, %v159
    %194 = vmatprep.subr.bf16.mxu0 %v177
    %195 = vmatpush1.bf16.msra.mxu0 %v176
    %196 = vmatprep.subr.bf16.mxu0 %v175
    %197 = vmatpush1.bf16.msra.mxu0 %v174
    %198 = vmatprep.subr.bf16.mxu0 %v173
    %199 = vmatpush1.bf16.msra.mxu0 %v172
    %200 = vmatprep.subr.bf16.mxu0 %v171
    %201 = vmatpush1.bf16.msra.mxu0 %v170
    %202 = vmatprep.subr.bf16.mxu0 %v169
    %203 = vmatpush1.bf16.msra.mxu0 %v168
    %204 = vmatprep.subr.bf16.mxu0 %v167
    %205 = vmatpush1.bf16.msra.mxu0 %v166
    %206 = vmatprep.subr.bf16.mxu0 %v165
    %207 = vmatpush1.bf16.msra.mxu0 %v164
    %208 = vmatprep.subr.bf16.mxu0 %v163
    %209 = vmatpush1.bf16.msra.mxu0 %v162
    %210 = vmatprep.subr.bf16.mxu0 0
    %211 = vmatpush2.bf16.msra.mxu0 0
    %212 = vmatprep.subr.bf16.mxu0 0
    %213 = vmatpush2.bf16.msra.mxu0 0
    %214 = vmatprep.subr.bf16.mxu0 0
    %215 = vmatpush2.bf16.msra.mxu0 0
    %216 = vmatprep.subr.bf16.mxu0 0
    %217 = vmatpush2.bf16.msra.mxu0 0
    %218 = vmatprep.subr.bf16.mxu0 0
    %219 = vmatpush2.bf16.msra.mxu0 0
    %220 = vmatprep.subr.bf16.mxu0 0
    %221 = vmatpush2.bf16.msra.mxu0 0
    %222 = vmatprep.subr.bf16.mxu0 0
    %223 = vmatpush2.bf16.msra.mxu0 0
    %224 = vmatprep.subr.bf16.mxu0 0
    %225 = vmatpush2.bf16.msra.mxu0 0
    %226 = vmatprep.mubr.bf16.mxu0 0
    %227 = vmatmul.mubr.bf16.gmra.mxu0 %v98
    %v228 = vpop.f32.mrf.mxu0
    %v229 = vadd.f32 %v59, %v228
    %v230 = vpop.f32.mrf.mxu0
    %v231 = vadd.f32 %v63, %v230
    %v232 = vpop.f32.mrf.mxu0
    %v233 = vadd.f32 %v59, %v232
    %v234 = vpop.f32.mrf.mxu0
    %v235 = vadd.f32 %v63, %v234
    %236 = vmatprep.mubr.bf16.mxu0 0
    %237 = vmatmul.mubr.bf16.gmra.mxu0 %v99
    %v238 = vpop.f32.mrf.mxu0
    %v239 = vadd.f32 %v59, %v238
    %v240 = vpop.f32.mrf.mxu0
    %v241 = vadd.f32 %v63, %v240
    %v242 = vpop.f32.mrf.mxu0
    %v243 = vadd.f32 %v59, %v242
    %v244 = vpop.f32.mrf.mxu0
    %v245 = vadd.f32 %v63, %v244
    %246 = vmatprep.mubr.bf16.mxu0 0
    %247 = vmatmul.mubr.bf16.gmra.mxu0 %v100
    %v248 = vpop.f32.mrf.mxu0
    %v249 = vadd.f32 %v59, %v248
    %v250 = vpop.f32.mrf.mxu0
    %v251 = vadd.f32 %v63, %v250
    %v252 = vpop.f32.mrf.mxu0
    %v253 = vadd.f32 %v59, %v252
    %v254 = vpop.f32.mrf.mxu0
    %v255 = vadd.f32 %v63, %v254
    %256 = vmatprep.mubr.bf16.mxu0 0
    %257 = vmatmul.mubr.bf16.gmra.mxu0 %v101
    %v258 = vpop.f32.mrf.mxu0
    %v259 = vadd.f32 %v59, %v258
    %v260 = vpop.f32.mrf.mxu0
    %v261 = vadd.f32 %v63, %v260
    %v262 = vpop.f32.mrf.mxu0
    %v263 = vadd.f32 %v59, %v262
    %v264 = vpop.f32.mrf.mxu0
    %v265 = vadd.f32 %v63, %v264
    %266 = vmatprep.mubr.bf16.mxu0 0
    %267 = vmatmul.mubr.bf16.gmra.mxu0 %v102
    %v268 = vpop.f32.mrf.mxu0
    %v269 = vadd.f32 %v59, %v268
    %v270 = vpop.f32.mrf.mxu0
    %v271 = vadd.f32 %v63, %v270
    %v272 = vpop.f32.mrf.mxu0
    %v273 = vadd.f32 %v59, %v272
    %v274 = vpop.f32.mrf.mxu0
    %v275 = vadd.f32 %v63, %v274
    %276 = vmatprep.mubr.bf16.mxu0 0
    %277 = vmatmul.mubr.bf16.gmra.mxu0 %v103
    %v278 = vpop.f32.mrf.mxu0
    %v279 = vadd.f32 %v59, %v278
    %v280 = vpop.f32.mrf.mxu0
    %v281 = vadd.f32 %v63, %v280
    %v282 = vpop.f32.mrf.mxu0
    %v283 = vadd.f32 %v59, %v282
    %v284 = vpop.f32.mrf.mxu0
    %v285 = vadd.f32 %v63, %v284
    %286 = vmatprep.mubr.bf16.mxu0 0
    %287 = vmatmul.mubr.bf16.gmra.mxu0 %v104
    %v288 = vpop.f32.mrf.mxu0
    %v289 = vadd.f32 %v59, %v288
    %v290 = vpop.f32.mrf.mxu0
    %v291 = vadd.f32 %v63, %v290
    %v292 = vpop.f32.mrf.mxu0
    %v293 = vadd.f32 %v59, %v292
    %v294 = vpop.f32.mrf.mxu0
    %v295 = vadd.f32 %v63, %v294
    %296 = vmatprep.mubr.bf16.mxu0 0
    %297 = vmatmul.mubr.bf16.gmra.mxu0 %v105
    %v298 = vpop.f32.mrf.mxu0
    %v299 = vadd.f32 %v59, %v298
    %v300 = vpop.f32.mrf.mxu0
    %v301 = vadd.f32 %v63, %v300
    %v302 = vpop.f32.mrf.mxu0
    %v303 = vadd.f32 %v59, %v302
    %v304 = vpop.f32.mrf.mxu0
    %v305 = vadd.f32 %v63, %v304
    %306 = vdwg.mxu0
    %v307 = vmul.f32 %v229, 0.5
    %v308 = vmul.f32 %v231, 0.5
    %v309 = vmul.f32 %v233, 0.5
    %v310 = vmul.f32 %v235, 0.5
    %v311 = vmul.f32 %v239, 0.5
    %v312 = vmul.f32 %v241, 0.5
    %v313 = vmul.f32 %v243, 0.5
    %v314 = vmul.f32 %v245, 0.5
    %v315 = vmul.f32 %v249, 0.5
    %v316 = vmul.f32 %v251, 0.5
    %v317 = vmul.f32 %v253, 0.5
    %v318 = vmul.f32 %v255, 0.5
    %v319 = vmul.f32 %v259, 0.5
    %v320 = vmul.f32 %v261, 0.5
    %v321 = vmul.f32 %v263, 0.5
    %v322 = vmul.f32 %v265, 0.5
    %v323 = vmul.f32 %v269, 0.5
    %v324 = vmul.f32 %v271, 0.5
    %v325 = vmul.f32 %v273, 0.5
    %v326 = vmul.f32 %v275, 0.5
    %v327 = vmul.f32 %v279, 0.5
    %v328 = vmul.f32 %v281, 0.5
    %v329 = vmul.f32 %v283, 0.5
    %v330 = vmul.f32 %v285, 0.5
    %v331 = vmul.f32 %v289, 0.5
    %v332 = vmul.f32 %v291, 0.5
    %v333 = vmul.f32 %v293, 0.5
    %v334 = vmul.f32 %v295, 0.5
    %v335 = vmul.f32 %v299, 0.5
    %v336 = vmul.f32 %v301, 0.5
    %v337 = vmul.f32 %v303, 0.5
    %v338 = vmul.f32 %v305, 0.5
    %v339 = vmul.f32 %v229, 0.044715
    %v340 = vmul.f32 %v231, 0.044715
    %v341 = vmul.f32 %v233, 0.044715
    %v342 = vmul.f32 %v235, 0.044715
    %v343 = vmul.f32 %v239, 0.044715
    %v344 = vmul.f32 %v241, 0.044715
    %v345 = vmul.f32 %v243, 0.044715
    %v346 = vmul.f32 %v245, 0.044715
    %v347 = vmul.f32 %v249, 0.044715
    %v348 = vmul.f32 %v251, 0.044715
    %v349 = vmul.f32 %v253, 0.044715
    %v350 = vmul.f32 %v255, 0.044715
    %v351 = vmul.f32 %v259, 0.044715
    %v352 = vmul.f32 %v261, 0.044715
    %v353 = vmul.f32 %v263, 0.044715
    %v354 = vmul.f32 %v265, 0.044715
    %v355 = vmul.f32 %v269, 0.044715
    %v356 = vmul.f32 %v271, 0.044715
    %v357 = vmul.f32 %v273, 0.044715
    %v358 = vmul.f32 %v275, 0.044715
    %v359 = vmul.f32 %v279, 0.044715
    %v360 = vmul.f32 %v281, 0.044715
    %v361 = vmul.f32 %v283, 0.044715
    %v362 = vmul.f32 %v285, 0.044715
    %v363 = vmul.f32 %v289, 0.044715
    %v364 = vmul.f32 %v291, 0.044715
    %v365 = vmul.f32 %v293, 0.044715
    %v366 = vmul.f32 %v295, 0.044715
    %v367 = vmul.f32 %v299, 0.044715
    %v368 = vmul.f32 %v301, 0.044715
    %v369 = vmul.f32 %v303, 0.044715
    %v370 = vmul.f32 %v305, 0.044715
    %v371 = vmul.f32 %v339, %v229
    %v372 = vmul.f32 %v340, %v231
    %v373 = vmul.f32 %v341, %v233
    %v374 = vmul.f32 %v342, %v235
    %v375 = vmul.f32 %v343, %v239
    %v376 = vmul.f32 %v344, %v241
    %v377 = vmul.f32 %v345, %v243
    %v378 = vmul.f32 %v346, %v245
    %v379 = vmul.f32 %v347, %v249
    %v380 = vmul.f32 %v348, %v251
    %v381 = vmul.f32 %v349, %v253
    %v382 = vmul.f32 %v350, %v255
    %v383 = vmul.f32 %v351, %v259
    %v384 = vmul.f32 %v352, %v261
    %v385 = vmul.f32 %v353, %v263
    %v386 = vmul.f32 %v354, %v265
    %v387 = vmul.f32 %v355, %v269
    %v388 = vmul.f32 %v356, %v271
    %v389 = vmul.f32 %v357, %v273
    %v390 = vmul.f32 %v358, %v275
    %v391 = vmul.f32 %v359, %v279
    %v392 = vmul.f32 %v360, %v281
    %v393 = vmul.f32 %v361, %v283
    %v394 = vmul.f32 %v362, %v285
    %v395 = vmul.f32 %v363, %v289
    %v396 = vmul.f32 %v364, %v291
    %v397 = vmul.f32 %v365, %v293
    %v398 = vmul.f32 %v366, %v295
    %v399 = vmul.f32 %v367, %v299
    %v400 = vmul.f32 %v368, %v301
    %v401 = vmul.f32 %v369, %v303
    %v402 = vmul.f32 %v370, %v305
    %v403 = vmul.f32 %v371, %v229
    %v404 = vmul.f32 %v372, %v231
    %v405 = vmul.f32 %v373, %v233
    %v406 = vmul.f32 %v374, %v235
    %v407 = vmul.f32 %v375, %v239
    %v408 = vmul.f32 %v376, %v241
    %v409 = vmul.f32 %v377, %v243
    %v410 = vmul.f32 %v378, %v245
    %v411 = vmul.f32 %v379, %v249
    %v412 = vmul.f32 %v380, %v251
    %v413 = vmul.f32 %v381, %v253
    %v414 = vmul.f32 %v382, %v255
    %v415 = vmul.f32 %v383, %v259
    %v416 = vmul.f32 %v384, %v261
    %v417 = vmul.f32 %v385, %v263
    %v418 = vmul.f32 %v386, %v265
    %v419 = vmul.f32 %v387, %v269
    %v420 = vmul.f32 %v388, %v271
    %v421 = vmul.f32 %v389, %v273
    %v422 = vmul.f32 %v390, %v275
    %v423 = vmul.f32 %v391, %v279
    %v424 = vmul.f32 %v392, %v281
    %v425 = vmul.f32 %v393, %v283
    %v426 = vmul.f32 %v394, %v285
    %v427 = vmul.f32 %v395, %v289
    %v428 = vmul.f32 %v396, %v291
    %v429 = vmul.f32 %v397, %v293
    %v430 = vmul.f32 %v398, %v295
    %v431 = vmul.f32 %v399, %v299
    %v432 = vmul.f32 %v400, %v301
    %v433 = vmul.f32 %v401, %v303
    %v434 = vmul.f32 %v402, %v305
    %v435 = vadd.f32 %v229, %v403
    %v436 = vadd.f32 %v231, %v404
    %v437 = vadd.f32 %v233, %v405
    %v438 = vadd.f32 %v235, %v406
    %v439 = vadd.f32 %v239, %v407
    %v440 = vadd.f32 %v241, %v408
    %v441 = vadd.f32 %v243, %v409
    %v442 = vadd.f32 %v245, %v410
    %v443 = vadd.f32 %v249, %v411
    %v444 = vadd.f32 %v251, %v412
    %v445 = vadd.f32 %v253, %v413
    %v446 = vadd.f32 %v255, %v414
    %v447 = vadd.f32 %v259, %v415
    %v448 = vadd.f32 %v261, %v416
    %v449 = vadd.f32 %v263, %v417
    %v450 = vadd.f32 %v265, %v418
    %v451 = vadd.f32 %v269, %v419
    %v452 = vadd.f32 %v271, %v420
    %v453 = vadd.f32 %v273, %v421
    %v454 = vadd.f32 %v275, %v422
    %v455 = vadd.f32 %v279, %v423
    %v456 = vadd.f32 %v281, %v424
    %v457 = vadd.f32 %v283, %v425
    %v458 = vadd.f32 %v285, %v426
    %v459 = vadd.f32 %v289, %v427
    %v460 = vadd.f32 %v291, %v428
    %v461 = vadd.f32 %v293, %v429
    %v462 = vadd.f32 %v295, %v430
    %v463 = vadd.f32 %v299, %v431
    %v464 = vadd.f32 %v301, %v432
    %v465 = vadd.f32 %v303, %v433
    %v466 = vadd.f32 %v305, %v434
    %v467 = vmul.f32 %v435, 0.7978846
    %v468 = vmul.f32 %v436, 0.7978846
    %v469 = vmul.f32 %v437, 0.7978846
    %v470 = vmul.f32 %v438, 0.7978846
    %v471 = vmul.f32 %v439, 0.7978846
    %v472 = vmul.f32 %v440, 0.7978846
    %v473 = vmul.f32 %v441, 0.7978846
    %v474 = vmul.f32 %v442, 0.7978846
    %v475 = vmul.f32 %v443, 0.7978846
    %v476 = vmul.f32 %v444, 0.7978846
    %v477 = vmul.f32 %v445, 0.7978846
    %v478 = vmul.f32 %v446, 0.7978846
    %v479 = vmul.f32 %v447, 0.7978846
    %v480 = vmul.f32 %v448, 0.7978846
    %v481 = vmul.f32 %v449, 0.7978846
    %v482 = vmul.f32 %v450, 0.7978846
    %v483 = vmul.f32 %v451, 0.7978846
    %v484 = vmul.f32 %v452, 0.7978846
    %v485 = vmul.f32 %v453, 0.7978846
    %v486 = vmul.f32 %v454, 0.7978846
    %v487 = vmul.f32 %v455, 0.7978846
    %v488 = vmul.f32 %v456, 0.7978846
    %v489 = vmul.f32 %v457, 0.7978846
    %v490 = vmul.f32 %v458, 0.7978846
    %v491 = vmul.f32 %v459, 0.7978846
    %v492 = vmul.f32 %v460, 0.7978846
    %v493 = vmul.f32 %v461, 0.7978846
    %v494 = vmul.f32 %v462, 0.7978846
    %v495 = vmul.f32 %v463, 0.7978846
    %v496 = vmul.f32 %v464, 0.7978846
    %v497 = vmul.f32 %v465, 0.7978846
    %v498 = vmul.f32 %v466, 0.7978846
    %v499 = vtanh.pop %v467
    %v500 = vtanh.pop %v468
    %v501 = vtanh.pop %v469
    %v502 = vtanh.pop %v470
    %v503 = vtanh.pop %v471
    %v504 = vtanh.pop %v472
    %v505 = vtanh.pop %v473
    %v506 = vtanh.pop %v474
    %v507 = vtanh.pop %v475
    %v508 = vtanh.pop %v476
    %v509 = vtanh.pop %v477
    %v510 = vtanh.pop %v478
    %v511 = vtanh.pop %v479
    %v512 = vtanh.pop %v480
    %v513 = vtanh.pop %v481
    %v514 = vtanh.pop %v482
    %v515 = vtanh.pop %v483
    %v516 = vtanh.pop %v484
    %v517 = vtanh.pop %v485
    %v518 = vtanh.pop %v486
    %v519 = vtanh.pop %v487
    %v520 = vtanh.pop %v488
    %v521 = vtanh.pop %v489
    %v522 = vtanh.pop %v490
    %v523 = vtanh.pop %v491
    %v524 = vtanh.pop %v492
    %v525 = vtanh.pop %v493
    %v526 = vtanh.pop %v494
    %v527 = vtanh.pop %v495
    %v528 = vtanh.pop %v496
    %v529 = vtanh.pop %v497
    %v530 = vtanh.pop %v498
    %v531 = vadd.f32 %v499, 1.0
    %v532 = vadd.f32 %v500, 1.0
    %v533 = vadd.f32 %v501, 1.0
    %v534 = vadd.f32 %v502, 1.0
    %v535 = vadd.f32 %v503, 1.0
    %v536 = vadd.f32 %v504, 1.0
    %v537 = vadd.f32 %v505, 1.0
    %v538 = vadd.f32 %v506, 1.0
    %v539 = vadd.f32 %v507, 1.0
    %v540 = vadd.f32 %v508, 1.0
    %v541 = vadd.f32 %v509, 1.0
    %v542 = vadd.f32 %v510, 1.0
    %v543 = vadd.f32 %v511, 1.0
    %v544 = vadd.f32 %v512, 1.0
    %v545 = vadd.f32 %v513, 1.0
    %v546 = vadd.f32 %v514, 1.0
    %v547 = vadd.f32 %v515, 1.0
    %v548 = vadd.f32 %v516, 1.0
    %v549 = vadd.f32 %v517, 1.0
    %v550 = vadd.f32 %v518, 1.0
    %v551 = vadd.f32 %v519, 1.0
    %v552 = vadd.f32 %v520, 1.0
    %v553 = vadd.f32 %v521, 1.0
    %v554 = vadd.f32 %v522, 1.0
    %v555 = vadd.f32 %v523, 1.0
    %v556 = vadd.f32 %v524, 1.0
    %v557 = vadd.f32 %v525, 1.0
    %v558 = vadd.f32 %v526, 1.0
    %v559 = vadd.f32 %v527, 1.0
    %v560 = vadd.f32 %v528, 1.0
    %v561 = vadd.f32 %v529, 1.0
    %v562 = vadd.f32 %v530, 1.0
    %v563 = vmul.f32 %v307, %v531
    %v564 = vmul.f32 %v308, %v532
    %v565 = vmul.f32 %v309, %v533
    %v566 = vmul.f32 %v310, %v534
    %v567 = vmul.f32 %v311, %v535
    %v568 = vmul.f32 %v312, %v536
    %v569 = vmul.f32 %v313, %v537
    %v570 = vmul.f32 %v314, %v538
    %v571 = vmul.f32 %v315, %v539
    %v572 = vmul.f32 %v316, %v540
    %v573 = vmul.f32 %v317, %v541
    %v574 = vmul.f32 %v318, %v542
    %v575 = vmul.f32 %v319, %v543
    %v576 = vmul.f32 %v320, %v544
    %v577 = vmul.f32 %v321, %v545
    %v578 = vmul.f32 %v322, %v546
    %v579 = vmul.f32 %v323, %v547
    %v580 = vmul.f32 %v324, %v548
    %v581 = vmul.f32 %v325, %v549
    %v582 = vmul.f32 %v326, %v550
    %v583 = vmul.f32 %v327, %v551
    %v584 = vmul.f32 %v328, %v552
    %v585 = vmul.f32 %v329, %v553
    %v586 = vmul.f32 %v330, %v554
    %v587 = vmul.f32 %v331, %v555
    %v588 = vmul.f32 %v332, %v556
    %v589 = vmul.f32 %v333, %v557
    %v590 = vmul.f32 %v334, %v558
    %v591 = vmul.f32 %v335, %v559
    %v592 = vmul.f32 %v336, %v560
    %v593 = vmul.f32 %v337, %v561
    %v594 = vmul.f32 %v338, %v562
    %v595 = vpack.c.bf16 %v565, %v563
    %v596 = vpack.c.bf16 %v566, %v564
    %v597 = vpack.c.bf16 %v569, %v567
    %v598 = vpack.c.bf16 %v570, %v568
    %v599 = vpack.c.bf16 %v573, %v571
    %v600 = vpack.c.bf16 %v574, %v572
    %v601 = vpack.c.bf16 %v577, %v575
    %v602 = vpack.c.bf16 %v578, %v576
    %v603 = vpack.c.bf16 %v581, %v579
    %v604 = vpack.c.bf16 %v582, %v580
    %v605 = vpack.c.bf16 %v585, %v583
    %v606 = vpack.c.bf16 %v586, %v584
    %v607 = vpack.c.bf16 %v589, %v587
    %v608 = vpack.c.bf16 %v590, %v588
    %v609 = vpack.c.bf16 %v593, %v591
    %v610 = vpack.c.bf16 %v594, %v592
    %v611 = vld [vmem:[%s3] sm:$0xf]
    %v612 = vld [vmem:[%s3 + $0x4] sm:$0xf]
    %v613 = vld [vmem:[%s3 + $0x8] sm:$0xf]
    %v614 = vld [vmem:[%s3 + $0xc] sm:$0xf]
    %v615 = vld [vmem:[%s3 + $0x10] sm:$0xf]
    %v616 = vld [vmem:[%s3 + $0x14] sm:$0xf]
    %v617 = vld [vmem:[%s3 + $0x18] sm:$0xf]
    %v618 = vld [vmem:[%s3 + $0x1c] sm:$0xf]
    %v619 = vld [vmem:[%s3 + $0x20] sm:$0xf]
    %v620 = vld [vmem:[%s3 + $0x24] sm:$0xf]
    %v621 = vld [vmem:[%s3 + $0x28] sm:$0xf]
    %v622 = vld [vmem:[%s3 + $0x2c] sm:$0xf]
    %v623 = vld [vmem:[%s3 + $0x30] sm:$0xf]
    %v624 = vld [vmem:[%s3 + $0x34] sm:$0xf]
    %v625 = vld [vmem:[%s3 + $0x38] sm:$0xf]
    %v626 = vld [vmem:[%s3 + $0x3c] sm:$0xf]
    %v627 = vld [vmem:[%s3 + $0x40] sm:$0xf]
    %v628 = vld [vmem:[%s3 + $0x44] sm:$0xf]
    %v629 = vld [vmem:[%s3 + $0x48] sm:$0xf]
    %v630 = vld [vmem:[%s3 + $0x4c] sm:$0xf]
    %v631 = vld [vmem:[%s3 + $0x50] sm:$0xf]
    %v632 = vld [vmem:[%s3 + $0x54] sm:$0xf]
    %v633 = vld [vmem:[%s3 + $0x58] sm:$0xf]
    %v634 = vld [vmem:[%s3 + $0x5c] sm:$0xf]
    %v635 = vld [vmem:[%s3 + $0x60] sm:$0xf]
    %v636 = vld [vmem:[%s3 + $0x64] sm:$0xf]
    %v637 = vld [vmem:[%s3 + $0x68] sm:$0xf]
    %v638 = vld [vmem:[%s3 + $0x6c] sm:$0xf]
    %v639 = vld [vmem:[%s3 + $0x70] sm:$0xf]
    %v640 = vld [vmem:[%s3 + $0x74] sm:$0xf]
    %v641 = vld [vmem:[%s3 + $0x78] sm:$0xf]
    %v642 = vld [vmem:[%s3 + $0x7c] sm:$0xf]
    %v643 = vld [vmem:[%s4] sm:$0x1]
    %v645 = vlaneseq
    %v646 = vshrl.u32 %v645, 7
    %v647 = vsub.s32 0, %v646
    %v648 = vrot.slane %v643, %v647
    %v682 = vunpack.c.l.b16 %v611
    %v683 = vunpack.c.l.b16 %v612
    %v684 = vunpack.c.l.b16 %v613
    %v685 = vunpack.c.l.b16 %v614
    %v686 = vunpack.c.l.b16 %v615
    %v687 = vunpack.c.l.b16 %v616
    %v688 = vunpack.c.l.b16 %v617
    %v689 = vunpack.c.l.b16 %v618
    %v690 = vunpack.c.l.b16 %v619
    %v691 = vunpack.c.l.b16 %v620
    %v692 = vunpack.c.l.b16 %v621
    %v693 = vunpack.c.l.b16 %v622
    %v694 = vunpack.c.l.b16 %v623
    %v695 = vunpack.c.l.b16 %v624
    %v696 = vunpack.c.l.b16 %v625
    %v697 = vunpack.c.l.b16 %v626
    %v698 = vunpack.c.l.b16 %v627
    %v699 = vunpack.c.l.b16 %v628
    %v700 = vunpack.c.l.b16 %v629
    %v701 = vunpack.c.l.b16 %v630
    %v702 = vunpack.c.l.b16 %v631
    %v703 = vunpack.c.l.b16 %v632
    %v704 = vunpack.c.l.b16 %v633
    %v705 = vunpack.c.l.b16 %v634
    %v706 = vunpack.c.l.b16 %v635
    %v707 = vunpack.c.l.b16 %v636
    %v708 = vunpack.c.l.b16 %v637
    %v709 = vunpack.c.l.b16 %v638
    %v710 = vunpack.c.l.b16 %v639
    %v711 = vunpack.c.l.b16 %v640
    %v712 = vunpack.c.l.b16 %v641
    %v713 = vunpack.c.l.b16 %v642
    %v714 = vpack.c.b16 %v683, %v682
    %v715 = vpack.c.b16 %v685, %v684
    %v716 = vpack.c.b16 %v687, %v686
    %v717 = vpack.c.b16 %v689, %v688
    %v718 = vpack.c.b16 %v691, %v690
    %v719 = vpack.c.b16 %v693, %v692
    %v720 = vpack.c.b16 %v695, %v694
    %v721 = vpack.c.b16 %v697, %v696
    %v722 = vpack.c.b16 %v699, %v698
    %v723 = vpack.c.b16 %v701, %v700
    %v724 = vpack.c.b16 %v703, %v702
    %v725 = vpack.c.b16 %v705, %v704
    %v726 = vpack.c.b16 %v707, %v706
    %v727 = vpack.c.b16 %v709, %v708
    %v728 = vpack.c.b16 %v711, %v710
    %v729 = vpack.c.b16 %v713, %v712
    %746 = vmatprep.subr.bf16.mxu0 0
    %747 = vmatpush1.bf16.msra.mxu0 %v721
    %748 = vmatprep.subr.bf16.mxu0 0
    %749 = vmatpush1.bf16.msra.mxu0 %v720
    %750 = vmatprep.subr.bf16.mxu0 0
    %751 = vmatpush1.bf16.msra.mxu0 %v719
    %752 = vmatprep.subr.bf16.mxu0 0
    %753 = vmatpush1.bf16.msra.mxu0 %v718
    %754 = vmatprep.subr.bf16.mxu0 0
    %755 = vmatpush1.bf16.msra.mxu0 %v717
    %756 = vmatprep.subr.bf16.mxu0 0
    %757 = vmatpush1.bf16.msra.mxu0 %v716
    %758 = vmatprep.subr.bf16.mxu0 0
    %759 = vmatpush1.bf16.msra.mxu0 %v715
    %760 = vmatprep.subr.bf16.mxu0 0
    %761 = vmatpush1.bf16.msra.mxu0 %v714
    %762 = vmatprep.subr.bf16.mxu0 0
    %763 = vmatpush2.bf16.msra.mxu0 %v729
    %764 = vmatprep.subr.bf16.mxu0 0
    %765 = vmatpush2.bf16.msra.mxu0 %v728
    %766 = vmatprep.subr.bf16.mxu0 0
    %767 = vmatpush2.bf16.msra.mxu0 %v727
    %768 = vmatprep.subr.bf16.mxu0 0
    %769 = vmatpush2.bf16.msra.mxu0 %v726
    %770 = vmatprep.subr.bf16.mxu0 0
    %771 = vmatpush2.bf16.msra.mxu0 %v725
    %772 = vmatprep.subr.bf16.mxu0 0
    %773 = vmatpush2.bf16.msra.mxu0 %v724
    %774 = vmatprep.subr.bf16.mxu0 0
    %775 = vmatpush2.bf16.msra.mxu0 %v723
    %776 = vmatprep.subr.bf16.mxu0 0
    %777 = vmatpush2.bf16.msra.mxu0 %v722
    %778 = vmatprep.mubr.bf16.mxu0 %v596
    %779 = vmatmul.mubr.bf16.gmra.mxu0 %v595
    %v780 = vpop.f32.mrf.mxu0
    %v781 = vadd.f32 %v648, %v780
    %v782 = vpop.f32.mrf.mxu0
    %v783 = vpop.f32.mrf.mxu0
    %v784 = vadd.f32 %v648, %v783
    %v785 = vpop.f32.mrf.mxu0
    %786 = vmatprep.mubr.bf16.mxu0 %v598
    %787 = vmatmul.mubr.bf16.gmra.mxu0 %v597
    %v788 = vpop.f32.mrf.mxu0
    %v789 = vadd.f32 %v648, %v788
    %v790 = vpop.f32.mrf.mxu0
    %v791 = vpop.f32.mrf.mxu0
    %v792 = vadd.f32 %v648, %v791
    %v793 = vpop.f32.mrf.mxu0
    %794 = vmatprep.mubr.bf16.mxu0 %v600
    %795 = vmatmul.mubr.bf16.gmra.mxu0 %v599
    %v796 = vpop.f32.mrf.mxu0
    %v797 = vadd.f32 %v648, %v796
    %v798 = vpop.f32.mrf.mxu0
    %v799 = vpop.f32.mrf.mxu0
    %v800 = vadd.f32 %v648, %v799
    %v801 = vpop.f32.mrf.mxu0
    %802 = vmatprep.mubr.bf16.mxu0 %v602
    %803 = vmatmul.mubr.bf16.gmra.mxu0 %v601
    %v804 = vpop.f32.mrf.mxu0
    %v805 = vadd.f32 %v648, %v804
    %v806 = vpop.f32.mrf.mxu0
    %v807 = vpop.f32.mrf.mxu0
    %v808 = vadd.f32 %v648, %v807
    %v809 = vpop.f32.mrf.mxu0
    %810 = vmatprep.mubr.bf16.mxu0 %v604
    %811 = vmatmul.mubr.bf16.gmra.mxu0 %v603
    %v812 = vpop.f32.mrf.mxu0
    %v813 = vadd.f32 %v648, %v812
    %v814 = vpop.f32.mrf.mxu0
    %v815 = vpop.f32.mrf.mxu0
    %v816 = vadd.f32 %v648, %v815
    %v817 = vpop.f32.mrf.mxu0
    %818 = vmatprep.mubr.bf16.mxu0 %v606
    %819 = vmatmul.mubr.bf16.gmra.mxu0 %v605
    %v820 = vpop.f32.mrf.mxu0
    %v821 = vadd.f32 %v648, %v820
    %v822 = vpop.f32.mrf.mxu0
    %v823 = vpop.f32.mrf.mxu0
    %v824 = vadd.f32 %v648, %v823
    %v825 = vpop.f32.mrf.mxu0
    %826 = vmatprep.mubr.bf16.mxu0 %v608
    %827 = vmatmul.mubr.bf16.gmra.mxu0 %v607
    %v828 = vpop.f32.mrf.mxu0
    %v829 = vadd.f32 %v648, %v828
    %v830 = vpop.f32.mrf.mxu0
    %v831 = vpop.f32.mrf.mxu0
    %v832 = vadd.f32 %v648, %v831
    %v833 = vpop.f32.mrf.mxu0
    %834 = vmatprep.mubr.bf16.mxu0 %v610
    %835 = vmatmul.mubr.bf16.gmra.mxu0 %v609
    %v836 = vpop.f32.mrf.mxu0
    %v837 = vadd.f32 %v648, %v836
    %v838 = vpop.f32.mrf.mxu0
    %v839 = vpop.f32.mrf.mxu0
    %v840 = vadd.f32 %v648, %v839
    %v841 = vpop.f32.mrf.mxu0
    %842 = vdwg.mxu0
    %843 = vst [vmem:[#allocation2] sm:$0xff] %v781
    %844 = vst [vmem:[#allocation2 + $0x8] sm:$0xff] %v784
    %845 = vst [vmem:[#allocation2 + $0x10] sm:$0xff] %v789
    %846 = vst [vmem:[#allocation2 + $0x18] sm:$0xff] %v792
    %847 = vst [vmem:[#allocation2 + $0x20] sm:$0xff] %v797
    %848 = vst [vmem:[#allocation2 + $0x28] sm:$0xff] %v800
    %849 = vst [vmem:[#allocation2 + $0x30] sm:$0xff] %v805
    %850 = vst [vmem:[#allocation2 + $0x38] sm:$0xff] %v808
    %851 = vst [vmem:[#allocation2 + $0x40] sm:$0xff] %v813
    %852 = vst [vmem:[#allocation2 + $0x48] sm:$0xff] %v816
    %853 = vst [vmem:[#allocation2 + $0x50] sm:$0xff] %v821
    %854 = vst [vmem:[#allocation2 + $0x58] sm:$0xff] %v824
    %855 = vst [vmem:[#allocation2 + $0x60] sm:$0xff] %v829
    %856 = vst [vmem:[#allocation2 + $0x68] sm:$0xff] %v832
    %857 = vst [vmem:[#allocation2 + $0x70] sm:$0xff] %v837
    %858 = vst [vmem:[#allocation2 + $0x78] sm:$0xff] %v840
    // Predicated region
    $region22: #{feed_forward.1} parent=1 // pred_check
      _
    $region23: #{feed_forward.1} parent=1 // pred_check_branch
      %860 = sbr.rel (0) target = $region25
    $region24: #{feed_forward.1} parent=1 // pred_region
      %s862 = ssub.s32 2048, 2048
      %863 = vsyncadd [#allocation3], %s862
      %s864 = sshll.u32 [#allocation2], 4
      %s865 = int_to_ptr.vmem [resolvable:$true] %s864
      %870 = dma.vmem_to_hbm [thread:$0]  %s865, 2048, %s5, [#allocation3], 128, 128, 8
    $region25: #{feed_forward.1} parent=1 // pred_fallthru
      _
    // Predicated region
    $region26: #{feed_forward.1} parent=1 // pred_check
      _
    $region27: #{feed_forward.1} parent=1 // pred_check_branch
      %872 = sbr.rel (0) target = $region29
    $region28: #{feed_forward.1} parent=1 // pred_region
      %873 = dma.done [#allocation3], 2048
    $region29: #{feed_forward.1} parent=1 // pred_fallthru
      _
    %874 = vsyncpa [#allocation3], 1

</llo_original>
